<compile_context>
chip_gen: v7x
topology: tpu7x:2x2x1
jax: 0.10.0
libtpu: 0.0.40
codegen_flags: <defaults>
</compile_context>

<pallas_src>
import functools
import math

import jax
import jax.numpy as jnp
import numpy as np
from jax.experimental import pallas as pl
from jax.experimental.pallas import tpu as pltpu


def build_pe_table(d_model: int, max_seq_len: int) -> jnp.ndarray:
    """Vectorized, faithful replica of the PyTorch __init__ double loop."""
    assert d_model % 2 == 0, "d_model must be even (reference writes pe[:, i+1])"
    pos = np.arange(max_seq_len, dtype=np.float64)[:, None]         # [T, 1]
    i_even = np.arange(0, d_model, 2, dtype=np.float64)[None, :]    # [1, D/2]
    # NOTE: the reference uses exponent 2*i/d for sin and 2*(i+1)/d for cos
    # (asymmetric).  That asymmetry is replicated exactly here.
    div_sin = np.power(10000.0, 2.0 * i_even / d_model)
    div_cos = np.power(10000.0, 2.0 * (i_even + 1.0) / d_model)
    pe = np.zeros((max_seq_len, d_model), dtype=np.float32)
    pe[:, 0::2] = np.sin(pos / div_sin).astype(np.float32)
    pe[:, 1::2] = np.cos(pos / div_cos).astype(np.float32)
    return jnp.asarray(pe)[None, :, :]                              # [1, T, D]


def _pos_enc_kernel(x_ref, m_ref, d_ref, pe_ref, xo_ref, mo_ref, do_ref, *, scale):
    # Blocks: x/m/delta are [TB, L]; pe is [1, L] and broadcasts over rows.
    pe = pe_ref[...].astype(jnp.float32)
    xo_ref[...] = (x_ref[...].astype(jnp.float32) * scale + pe).astype(xo_ref.dtype)
    mo_ref[...] = (m_ref[...].astype(jnp.float32) * scale + pe).astype(mo_ref.dtype)
    do_ref[...] = (d_ref[...].astype(jnp.float32) * scale + pe).astype(do_ref.dtype)


_VMEM_LIMIT_BYTES = 32 * 1024 * 1024    # safe on v5e/v6e (128 MiB phys) and v7x (64 MiB phys)
_TILE_BUDGET_BYTES = 20 * 1024 * 1024   # headroom below the scoped limit
_SMALL_PROBLEM_BYTES = 256 * 1024       # below this, fused XLA beats pallas_call overhead


def _choose_row_tile(B, L, itemsize):
    # 3 inputs + 3 outputs, double-buffered, plus the resident pe block.
    row_bytes = L * itemsize
    max_rows = _TILE_BUDGET_BYTES // (14 * row_bytes)
    if max_rows >= B:
        return B
    return max(8, (int(max_rows) // 8) * 8)


def positional_encoder_forward(x, m, delta, t, pe, d_model, *, force_pallas=False):
    """Mirrors PositionalEncoder.forward; `t` is unused (as in the reference)."""
    del t  # unused by the reference forward
    B, S, D = x.shape
    assert D == d_model
    scale = float(math.sqrt(d_model))
    pe_slice = pe[:, :S, :]                                          # [1, S, D]

    total_bytes = 3 * x.size * jnp.dtype(x.dtype).itemsize
    if not force_pallas and total_bytes < _SMALL_PROBLEM_BYTES:
        # Toy sizes: let XLA's fused elementwise handle it at roofline.
        return ((x * scale + pe_slice).astype(x.dtype),
                (m * scale + pe_slice).astype(m.dtype),
                (delta * scale + pe_slice).astype(delta.dtype))

    # Lane-dense layout: [B, S, D] -> [B, S*D]; pe -> [1, S*D].
    L = S * D
    x2, m2, d2 = x.reshape(B, L), m.reshape(B, L), delta.reshape(B, L)
    pe2 = pe_slice.reshape(1, L)

    TB = _choose_row_tile(B, L, jnp.dtype(x.dtype).itemsize)
    grid = (pl.cdiv(B, TB),)

    io_spec = pl.BlockSpec((TB, L), lambda i: (i, 0))
    pe_spec = pl.BlockSpec((1, L), lambda i: (0, 0))   # constant index: pe stays resident

    kernel = functools.partial(_pos_enc_kernel, scale=scale)
    out_shape = (
        jax.ShapeDtypeStruct((B, L), x.dtype),
        jax.ShapeDtypeStruct((B, L), m.dtype),
        jax.ShapeDtypeStruct((B, L), delta.dtype),
    )
    xo, mo, do = pl.pallas_call(
        kernel,
        out_shape=out_shape,
        grid_spec=pltpu.PrefetchScalarGridSpec(
            num_scalar_prefetch=0,
            grid=grid,
            in_specs=[io_spec, io_spec, io_spec, pe_spec],
            out_specs=[io_spec, io_spec, io_spec],
        ),
        compiler_params=pltpu.CompilerParams(
            dimension_semantics=("parallel",),       # shards rows across v7x's 2 TCs
            vmem_limit_bytes=_VMEM_LIMIT_BYTES,
        ),
    )(x2, m2, d2, pe2)
    return xo.reshape(B, S, D), mo.reshape(B, S, D), do.reshape(B, S, D)


if __name__ == "__main__":
    d_model = 32
    max_seq_len = 16
    B, S = 2, 8

    pe = build_pe_table(d_model, max_seq_len)

    key = jax.random.PRNGKey(0)
    kx, km, kd = jax.random.split(key, 3)
    x = jax.random.normal(kx, (B, S, d_model), dtype=jnp.float32)
    m = jax.random.normal(km, (B, S, d_model), dtype=jnp.float32)
    delta = jax.random.normal(kd, (B, S, d_model), dtype=jnp.float32)
    t = jnp.zeros((B, S), dtype=jnp.float32)   # unused, kept for signature parity

    # force_pallas=True so the Pallas path (not the small-size XLA fallback)
    # is exercised at this toy shape.
    xo, mo, do = positional_encoder_forward(x, m, delta, t, pe, d_model,
                                            force_pallas=True)
    jax.block_until_ready((xo, mo, do))

    # Reference check in plain JAX (f32).
    scale = math.sqrt(d_model)
    pe_s = pe[:, :S]
    np.testing.assert_allclose(np.asarray(xo), np.asarray(x * scale + pe_s),
                               rtol=1e-6, atol=1e-6)
    np.testing.assert_allclose(np.asarray(mo), np.asarray(m * scale + pe_s),
                               rtol=1e-6, atol=1e-6)
    np.testing.assert_allclose(np.asarray(do), np.asarray(delta * scale + pe_s),
                               rtol=1e-6, atol=1e-6)

    # bf16 inputs: kernel computes in f32 and casts once at the store.
    xb, mb, db = (a.astype(jnp.bfloat16) for a in (x, m, delta))
    xob, mob, dob = positional_encoder_forward(xb, mb, db, t, pe, d_model,
                                               force_pallas=True)
    jax.block_until_ready((xob, mob, dob))
    ref_b = (xb.astype(jnp.float32) * scale + pe_s).astype(jnp.bfloat16)
    np.testing.assert_allclose(np.asarray(xob.astype(jnp.float32)),
                               np.asarray(ref_b.astype(jnp.float32)),
                               rtol=2e-2, atol=2e-2)

    print("KERNEL_OK")
</pallas_src>

<mosaic_0001>
module attributes {stable_mosaic.version = 11 : i64} {
  func.func @_pos_enc_kernel(%arg0: i32, %arg1: memref<2x256xf32, #tpu.memory_space<vmem>>, %arg2: memref<2x256xf32, #tpu.memory_space<vmem>>, %arg3: memref<2x256xf32, #tpu.memory_space<vmem>>, %arg4: memref<1x256xf32, #tpu.memory_space<vmem>>, %arg5: memref<2x256xf32, #tpu.memory_space<vmem>>, %arg6: memref<2x256xf32, #tpu.memory_space<vmem>>, %arg7: memref<2x256xf32, #tpu.memory_space<vmem>>) attributes {dimension_semantics = [#tpu.dimension_semantics<parallel>], iteration_bounds = array<i64: 1>, scalar_prefetch = 0 : i64, scratch_operands = 0 : i64, tpu.core_type = #tpu.core_type<tc>, window_params = [{transform_indices = @transform_0, window_bounds = array<i64: 2, 256>}, {transform_indices = @transform_1, window_bounds = array<i64: 2, 256>}, {transform_indices = @transform_2, window_bounds = array<i64: 2, 256>}, {pipeline_mode = #tpu.pipeline_mode<synchronous>, transform_indices = @transform_3, window_bounds = array<i64: 1, 256>}, {transform_indices = @transform_4, window_bounds = array<i64: 2, 256>}, {transform_indices = @transform_5, window_bounds = array<i64: 2, 256>}, {transform_indices = @transform_6, window_bounds = array<i64: 2, 256>}]} {
    %c0 = arith.constant 0 : index
    %c0_0 = arith.constant 0 : index
    %0 = vector.load %arg4[%c0, %c0_0] : memref<1x256xf32, #tpu.memory_space<vmem>>, vector<1x256xf32>
    %c0_1 = arith.constant 0 : index
    %c0_2 = arith.constant 0 : index
    %1 = vector.load %arg1[%c0_1, %c0_2] : memref<2x256xf32, #tpu.memory_space<vmem>>, vector<2x256xf32>
    %cst = arith.constant 5.65685415 : f32
    %2 = vector.broadcast %cst : f32 to vector<2x256xf32>
    %3 = arith.mulf %1, %2 : vector<2x256xf32>
    %4 = vector.broadcast %0 : vector<1x256xf32> to vector<2x256xf32>
    %5 = arith.addf %3, %4 : vector<2x256xf32>
    %c0_3 = arith.constant 0 : index
    %c0_4 = arith.constant 0 : index
    %6 = vector.load %arg5[%c0_3, %c0_4] : memref<2x256xf32, #tpu.memory_space<vmem>>, vector<2x256xf32>
    tpu.vector_store %arg5[%c0_3, %c0_4], %5 {strides = array<i32>} : memref<2x256xf32, #tpu.memory_space<vmem>>, vector<2x256xf32>,
    %c0_5 = arith.constant 0 : index
    %c0_6 = arith.constant 0 : index
    %7 = vector.load %arg2[%c0_5, %c0_6] : memref<2x256xf32, #tpu.memory_space<vmem>>, vector<2x256xf32>
    %cst_7 = arith.constant 5.65685415 : f32
    %8 = vector.broadcast %cst_7 : f32 to vector<2x256xf32>
    %9 = arith.mulf %7, %8 : vector<2x256xf32>
    %10 = vector.broadcast %0 : vector<1x256xf32> to vector<2x256xf32>
    %11 = arith.addf %9, %10 : vector<2x256xf32>
    %c0_8 = arith.constant 0 : index
    %c0_9 = arith.constant 0 : index
    %12 = vector.load %arg6[%c0_8, %c0_9] : memref<2x256xf32, #tpu.memory_space<vmem>>, vector<2x256xf32>
    tpu.vector_store %arg6[%c0_8, %c0_9], %11 {strides = array<i32>} : memref<2x256xf32, #tpu.memory_space<vmem>>, vector<2x256xf32>,
    %c0_10 = arith.constant 0 : index
    %c0_11 = arith.constant 0 : index
    %13 = vector.load %arg3[%c0_10, %c0_11] : memref<2x256xf32, #tpu.memory_space<vmem>>, vector<2x256xf32>
    %cst_12 = arith.constant 5.65685415 : f32
    %14 = vector.broadcast %cst_12 : f32 to vector<2x256xf32>
    %15 = arith.mulf %13, %14 : vector<2x256xf32>
    %16 = vector.broadcast %0 : vector<1x256xf32> to vector<2x256xf32>
    %17 = arith.addf %15, %16 : vector<2x256xf32>
    %c0_13 = arith.constant 0 : index
    %c0_14 = arith.constant 0 : index
    %18 = vector.load %arg7[%c0_13, %c0_14] : memref<2x256xf32, #tpu.memory_space<vmem>>, vector<2x256xf32>
    tpu.vector_store %arg7[%c0_13, %c0_14], %17 {strides = array<i32>} : memref<2x256xf32, #tpu.memory_space<vmem>>, vector<2x256xf32>,
    return
  }
  func.func @transform_0(%arg0: i32) -> (i32, i32) {
    %c0_i32 = arith.constant 0 : i32
    %c0_i32_0 = arith.constant 0 : i32
    return %arg0, %c0_i32 : i32, i32
  }
  func.func @transform_1(%arg0: i32) -> (i32, i32) {
    %c0_i32 = arith.constant 0 : i32
    %c0_i32_0 = arith.constant 0 : i32
    return %arg0, %c0_i32 : i32, i32
  }
  func.func @transform_2(%arg0: i32) -> (i32, i32) {
    %c0_i32 = arith.constant 0 : i32
    %c0_i32_0 = arith.constant 0 : i32
    return %arg0, %c0_i32 : i32, i32
  }
  func.func @transform_3(%arg0: i32) -> (i32, i32) {
    %c0_i32 = arith.constant 0 : i32
    %c0_i32_0 = arith.constant 0 : i32
    %c0_i32_1 = arith.constant 0 : i32
    return %c0_i32, %c0_i32_0 : i32, i32
  }
  func.func @transform_4(%arg0: i32) -> (i32, i32) {
    %c0_i32 = arith.constant 0 : i32
    %c0_i32_0 = arith.constant 0 : i32
    return %arg0, %c0_i32 : i32, i32
  }
  func.func @transform_5(%arg0: i32) -> (i32, i32) {
    %c0_i32 = arith.constant 0 : i32
    %c0_i32_0 = arith.constant 0 : i32
    return %arg0, %c0_i32 : i32, i32
  }
  func.func @transform_6(%arg0: i32) -> (i32, i32) {
    %c0_i32 = arith.constant 0 : i32
    %c0_i32_0 = arith.constant 0 : i32
    return %arg0, %c0_i32 : i32, i32
  }
}

</mosaic_0001>

<llo_original>
// kernel: tpu_custom_call.1
$region0: #{tpu_custom_call.1}
  #allocation0 [shape = 'u32[]', space=smem, size = 0x4, offset = 0x4, fixed_abs, tag = 'smem constant byte address 0x4 - core index']
  #allocation1 [shape = 'u32[144,128]{1,0:T(1,128)}', space=vmem, size = 0x12000, scoped, tag = 'internal scratch']
  %s0 = inlined_call_operand.hbm [shape: f32[2,256], index: 0, kind: input, shape index: {}]
  %s1 = inlined_call_operand.hbm [shape: f32[2,256], index: 1, kind: input, shape index: {}]
  %s2 = inlined_call_operand.vmem [shape: f32[2,256], index: 2, kind: input, shape index: {}]
  %s3 = inlined_call_operand.vmem [shape: f32[1,256], index: 3, kind: input, shape index: {}]
  %s4 = inlined_call_operand.hbm [shape: f32[2,256], index: 4, kind: output, shape index: {0}]
  %s5 = inlined_call_operand.hbm [shape: f32[2,256], index: 5, kind: output, shape index: {1}]
  %s6 = inlined_call_operand.hbm [shape: f32[2,256], index: 6, kind: output, shape index: {2}]
  %7 = xla_tuple %s4, %s5, %s6
  %s8 = sld [smem:[#allocation0]]
  $region50: #{tpu_custom_call.1} parent=0
    _
  %s10 = ssub.s32 1, %s8
  %s11 = scalar_select 0, %s10, %s8
  $region1: #{tpu_custom_call.1} parent=0
    #allocation2 [shape = 'u8[2048]{0}', space=vmem, size = 0x800, scoped, tag = 'input window, operand 0, single buffered']
    #allocation3 [shape = 's32[1]{0}', space=sflag, size = 0x4, scoped, tag = 'scoped memory for tpu_custom_call.1']
    #allocation4 [shape = 's32[1]{0}', space=sflag, size = 0x4, scoped, tag = 'scoped memory for tpu_custom_call.1']
    #allocation5 [shape = 'u8[2048]{0}', space=vmem, size = 0x800, scoped, tag = 'input window, operand 1, single buffered']
    #allocation6 [shape = 's32[1]{0}', space=sflag, size = 0x4, scoped, tag = 'scoped memory for tpu_custom_call.1']
    #allocation7 [shape = 'u8[2048]{0}', space=vmem, size = 0x800, scoped, tag = 'output window, operand 0, single buffered']
    #allocation8 [shape = 'u8[2048]{0}', space=vmem, size = 0x800, scoped, tag = 'output window, operand 1, single buffered']
    #allocation9 [shape = 's32[1]{0}', space=sflag, size = 0x4, scoped, tag = 'scoped memory for tpu_custom_call.1']
    #allocation10 [shape = 'u8[2048]{0}', space=vmem, size = 0x800, scoped, tag = 'output window, operand 2, single buffered']
    %12 = vsyncpa [#allocation3], 0
    %13 = vsyncpa [#allocation6], 0
    %14 = vsyncpa [#allocation4], 0
    %15 = vsyncpa [#allocation9], 0
    // Predicated region
    $region2: #{tpu_custom_call.1} parent=1 // pred_check
      _
    $region3: #{tpu_custom_call.1} parent=1 // pred_check_branch
      %17 = sbr.rel (0) target = $region5
    $region4: #{tpu_custom_call.1} parent=1 // pred_region
      %s19 = ssub.s32 64, 64
      %20 = vsyncadd [#allocation3], %s19
      %s22 = sshll.u32 [#allocation2], 4
      %s23 = int_to_ptr.vmem [resolvable:$true] %s22
      %25 = dma.hbm_to_vmem [thread:$0]  %s0, 64, %s23, [#allocation3]
    $region5: #{tpu_custom_call.1} parent=1 // pred_fallthru
      _
    // Predicated region
    $region6: #{tpu_custom_call.1} parent=1 // pred_check
      _
    $region7: #{tpu_custom_call.1} parent=1 // pred_check_branch
      %27 = sbr.rel (0) target = $region9
    $region8: #{tpu_custom_call.1} parent=1 // pred_region
      %s29 = ssub.s32 64, 64
      %30 = vsyncadd [#allocation6], %s29
      %s32 = sshll.u32 [#allocation5], 4
      %s33 = int_to_ptr.vmem [resolvable:$true] %s32
      %35 = dma.hbm_to_vmem [thread:$0]  %s1, 64, %s33, [#allocation6]
    $region9: #{tpu_custom_call.1} parent=1 // pred_fallthru
      _
    // Predicated region
    $region10: #{tpu_custom_call.1} parent=1 // pred_check
      _
    $region11: #{tpu_custom_call.1} parent=1 // pred_check_branch
      %37 = sbr.rel (0) target = $region13
    $region12: #{tpu_custom_call.1} parent=1 // pred_region
      _
    $region13: #{tpu_custom_call.1} parent=1 // pred_fallthru
      _
    // Predicated region
    $region14: #{tpu_custom_call.1} parent=1 // pred_check
      _
    $region15: #{tpu_custom_call.1} parent=1 // pred_check_branch
      %39 = sbr.rel (0) target = $region17
    $region16: #{tpu_custom_call.1} parent=1 // pred_region
      _
    $region17: #{tpu_custom_call.1} parent=1 // pred_fallthru
      _
    // Predicated region
    $region18: #{tpu_custom_call.1} parent=1 // pred_check
      _
    $region19: #{tpu_custom_call.1} parent=1 // pred_check_branch
      %41 = sbr.rel (0) target = $region21
    $region20: #{tpu_custom_call.1} parent=1 // pred_region
      %42 = dma.done [#allocation3], 64
    $region21: #{tpu_custom_call.1} parent=1 // pred_fallthru
      _
    // Predicated region
    $region22: #{tpu_custom_call.1} parent=1 // pred_check
      _
    $region23: #{tpu_custom_call.1} parent=1 // pred_check_branch
      %44 = sbr.rel (0) target = $region25
    $region24: #{tpu_custom_call.1} parent=1 // pred_region
      %45 = dma.done [#allocation6], 64
    $region25: #{tpu_custom_call.1} parent=1 // pred_fallthru
      _
    %v46 = vld [vmem:[%s3] sm:$0x3]
    %v47 = vld [vmem:[#allocation2] sm:$0xf]
    %v48 = vmul.f32 %v47, 5.656854
    %v50 = vlaneseq
    %v51 = vshrl.u32 %v50, 7
    %v52 = vsub.s32 0, %v51
    %v53 = vrot.slane %v46, %v52
    %v54 = vlaneseq
    %v55 = vshrl.u32 %v54, 7
    %v56 = vsub.s32 1, %v55
    %v57 = vrot.slane %v46, %v56
    %v58 = vcombine.low %v53, %v57
    %v60 = vunpack.c.l.s4 1983009808
    %v61 = vunpack.c.0.s8 %v60
    %v62 = vlaneseq
    %v63 = vshrl.u32 %v62, 7
    %v64 = vsub.s32 %v61, %v63
    %v65 = vrot.slane %v58, %v64
    %v67 = vadd.f32 %v48, %v65
    %68 = vst [vmem:[#allocation7] sm:$0xf] %v67
    %v69 = vld [vmem:[#allocation5] sm:$0xf]
    %v70 = vmul.f32 %v69, 5.656854
    %v71 = vadd.f32 %v70, %v65
    %72 = vst [vmem:[#allocation8] sm:$0xf] %v71
    %v73 = vld [vmem:[%s2] sm:$0xf]
    %v74 = vmul.f32 %v73, 5.656854
    %v75 = vadd.f32 %v74, %v65
    %76 = vst [vmem:[#allocation10] sm:$0xf] %v75
    // Predicated region
    $region26: #{tpu_custom_call.1} parent=1 // pred_check
      _
    $region27: #{tpu_custom_call.1} parent=1 // pred_check_branch
      %78 = sbr.rel (0) target = $region29
    $region28: #{tpu_custom_call.1} parent=1 // pred_region
      %s80 = ssub.s32 64, 64
      %81 = vsyncadd [#allocation4], %s80
      %s83 = sshll.u32 [#allocation7], 4
      %s84 = int_to_ptr.vmem [resolvable:$true] %s83
      %86 = dma.vmem_to_hbm [thread:$0]  %s84, 64, %s4, [#allocation4]
    $region29: #{tpu_custom_call.1} parent=1 // pred_fallthru
      _
    // Predicated region
    $region30: #{tpu_custom_call.1} parent=1 // pred_check
      _
    $region31: #{tpu_custom_call.1} parent=1 // pred_check_branch
      %88 = sbr.rel (0) target = $region33
    $region32: #{tpu_custom_call.1} parent=1 // pred_region
      %s90 = ssub.s32 64, 64
      %91 = vsyncadd [#allocation9], %s90
      %s93 = sshll.u32 [#allocation8], 4
      %s94 = int_to_ptr.vmem [resolvable:$true] %s93
      %96 = dma.vmem_to_hbm [thread:$0]  %s94, 64, %s5, [#allocation9]
    $region33: #{tpu_custom_call.1} parent=1 // pred_fallthru
      _
    // Predicated region
    $region34: #{tpu_custom_call.1} parent=1 // pred_check
      _
    $region35: #{tpu_custom_call.1} parent=1 // pred_check_branch
      %98 = sbr.rel (0) target = $region37
    $region36: #{tpu_custom_call.1} parent=1 // pred_region
      %s100 = ssub.s32 64, 64
      %101 = vsyncadd [#allocation9], %s100
      %s103 = sshll.u32 [#allocation10], 4
      %s104 = int_to_ptr.vmem [resolvable:$true] %s103
      %106 = dma.vmem_to_hbm [thread:$0]  %s104, 64, %s6, [#allocation9]
    $region37: #{tpu_custom_call.1} parent=1 // pred_fallthru
      _
    // Predicated region
    $region38: #{tpu_custom_call.1} parent=1 // pred_check
      _
    $region39: #{tpu_custom_call.1} parent=1 // pred_check_branch
      %108 = sbr.rel (0) target = $region41
    $region40: #{tpu_custom_call.1} parent=1 // pred_region
      %109 = dma.done [#allocation4], 64
    $region41: #{tpu_custom_call.1} parent=1 // pred_fallthru
      _
    // Predicated region
    $region42: #{tpu_custom_call.1} parent=1 // pred_check
      _
    $region43: #{tpu_custom_call.1} parent=1 // pred_check_branch
      %111 = sbr.rel (0) target = $region45
    $region44: #{tpu_custom_call.1} parent=1 // pred_region
      %112 = dma.done [#allocation9], 64
    $region45: #{tpu_custom_call.1} parent=1 // pred_fallthru
      _
    // Predicated region
    $region46: #{tpu_custom_call.1} parent=1 // pred_check
      _
    $region47: #{tpu_custom_call.1} parent=1 // pred_check_branch
      %114 = sbr.rel (0) target = $region49
    $region48: #{tpu_custom_call.1} parent=1 // pred_region
      %115 = dma.done [#allocation9], 64
    $region49: #{tpu_custom_call.1} parent=1 // pred_fallthru
      _
    %116 = vsyncpa [#allocation3], 1
    %117 = vsyncpa [#allocation6], 1
    %118 = vsyncpa [#allocation4], 1
    %119 = vsyncpa [#allocation9], 1

</llo_original>
